<compile_context>
chip_gen: v7x
topology: tpu7x:2x2x1
jax: 0.10.0
libtpu: 0.0.40
codegen_flags: <defaults>
</compile_context>

<pallas_src>
import functools

import jax
import jax.numpy as jnp
from jax.experimental import pallas as pl
from jax.experimental.pallas import tpu as pltpu


def _round_up(v, m):
    return ((v + m - 1) // m) * m


def _ffn_kernel(x_ref, w1_ref, b1_ref, w2_ref, b2_ref, o_ref, acc_ref):
    # x_ref:  (tm, d_model)  bf16
    # w1_ref: (d_model, tf)  bf16      b1_ref: (1, tf)      f32
    # w2_ref: (tf, d_model)  bf16      b2_ref: (1, d_model) f32
    # o_ref:  (tm, d_model)  x.dtype   acc_ref: (tm, d_model) f32 scratch
    j = pl.program_id(1)

    @pl.when(j == 0)
    def _():
        acc_ref[...] = jnp.zeros_like(acc_ref)

    # First matmul on the current d_ff tile, f32 accumulation on the MXU.
    h = jnp.dot(x_ref[...], w1_ref[...], preferred_element_type=jnp.float32)
    h = h + b1_ref[...]
    # Swish == SiLU: h * sigmoid(h)  (elementwise along d_ff, so per-tile is exact).
    h = h * jax.nn.sigmoid(h)
    # TODO(synk): training-mode dropout (pltpu.prng_random_bits mask) not implemented;
    #             module is evaluated in inference mode -> identity.

    # Second matmul: cast activation to bf16 for the MXU, keep f32 accumulation.
    acc_ref[...] += jnp.dot(h.astype(w2_ref.dtype), w2_ref[...],
                            preferred_element_type=jnp.float32)

    @pl.when(j == pl.num_programs(1) - 1)
    def _():
        o_ref[...] = (acc_ref[...] + b2_ref[...]).astype(o_ref.dtype)


def conformer_feed_forward(x, w1, b1, w2, b2, *, tm=256, tf=512):
    """x: (B, T, d_model). w1: (d_model, d_ff), b1: (d_ff,), w2: (d_ff, d_model), b2: (d_model,)."""
    B, T, d_model = x.shape
    d_ff = w1.shape[1]
    M = B * T
    out_dtype = x.dtype

    # Row tile: multiple of 16 (bf16 sublane packing), no larger than the (padded) row count.
    tm = min(tm, _round_up(M, 16))
    tm = _round_up(tm, 16)
    Mp = _round_up(M, tm)

    # d_ff tile: must evenly divide d_ff (and be a multiple of 128 when tiling); otherwise untiled.
    if d_ff % tf != 0:
        tf = d_ff

    x2d = x.reshape(M, d_model)
    if Mp != M:
        x2d = jnp.pad(x2d, ((0, Mp - M), (0, 0)))

    # bf16 MXU operands; biases stay f32 (added on the f32 accumulator path).
    x_bf = x2d.astype(jnp.bfloat16)
    w1_bf = w1.astype(jnp.bfloat16)
    w2_bf = w2.astype(jnp.bfloat16)
    b1_2d = b1.reshape(1, d_ff).astype(jnp.float32)
    b2_2d = b2.reshape(1, d_model).astype(jnp.float32)

    grid = (Mp // tm, d_ff // tf)

    # Explicit VMEM budget: x/out double-buffers + tiled weights + acc scratch + h temp, +50% headroom.
    out_itemsize = jnp.dtype(out_dtype).itemsize
    vmem_est = (
        2 * tm * d_model * 2          # x tile, double-buffered, bf16
        + 2 * tm * d_model * out_itemsize  # out tile, double-buffered
        + tm * d_model * 4            # f32 accumulator scratch
        + 2 * d_model * tf * 2        # W1 tile, double-buffered, bf16
        + 2 * tf * d_model * 2        # W2 tile, double-buffered, bf16
        + 2 * tf * 4 + 2 * d_model * 4  # biases
        + tm * tf * 4                 # h intermediate (f32)
    )
    vmem_limit = min(100 * 1024 * 1024, max(32 * 1024 * 1024, int(vmem_est * 1.5)))

    cost = pl.CostEstimate(
        flops=2 * 2 * M * d_model * d_ff,
        transcendentals=M * d_ff,
        bytes_accessed=(M * d_model * (2 + out_itemsize)
                        + 2 * d_model * d_ff * 2
                        + 4 * (d_ff + d_model)),
    )

    out2d = pl.pallas_call(
        _ffn_kernel,
        out_shape=jax.ShapeDtypeStruct((Mp, d_model), out_dtype),
        grid_spec=pltpu.PrefetchScalarGridSpec(
            num_scalar_prefetch=0,
            grid=grid,
            in_specs=[
                pl.BlockSpec((tm, d_model), lambda i, j: (i, 0)),   # x rows (resident across j)
                pl.BlockSpec((d_model, tf), lambda i, j: (0, j)),   # W1 d_ff tile
                pl.BlockSpec((1, tf), lambda i, j: (0, j)),         # b1 d_ff tile
                pl.BlockSpec((tf, d_model), lambda i, j: (j, 0)),   # W2 d_ff tile
                pl.BlockSpec((1, d_model), lambda i, j: (0, 0)),    # b2 (constant)
            ],
            out_specs=pl.BlockSpec((tm, d_model), lambda i, j: (i, 0)),
            scratch_shapes=[pltpu.VMEM((tm, d_model), jnp.float32)],
        ),
        compiler_params=pltpu.CompilerParams(
            dimension_semantics=("parallel", "arbitrary"),
            vmem_limit_bytes=vmem_limit,
        ),
        cost_estimate=cost,
    )(x_bf, w1_bf, b1_2d, w2_bf, b2_2d)

    return out2d[:M].reshape(B, T, d_model)


def init_params(key, d_model, d_ff, dtype=jnp.float32):
    """Deterministic init matching reset_parameters_ff: uniform(-fan_in**-0.5, fan_in**-0.5)."""
    k1, k2, k3, k4 = jax.random.split(key, 4)
    ffn1_max = d_model ** (-0.5)
    ffn2_max = d_ff ** (-0.5)
    # PyTorch Linear weight is (out, in); store transposed as (in, out) for the kernel.
    w1 = jax.random.uniform(k1, (d_model, d_ff), dtype, -ffn1_max, ffn1_max)
    b1 = jax.random.uniform(k2, (d_ff,), dtype, -ffn1_max, ffn1_max)
    w2 = jax.random.uniform(k3, (d_ff, d_model), dtype, -ffn2_max, ffn2_max)
    b2 = jax.random.uniform(k4, (d_model,), dtype, -ffn2_max, ffn2_max)
    return w1, b1, w2, b2


if __name__ == "__main__":
    key = jax.random.PRNGKey(0)
    B, T, d_model, d_ff = 2, 16, 128, 256

    kx, kp = jax.random.split(key)
    x = jax.random.normal(kx, (B, T, d_model), jnp.float32)
    w1, b1, w2, b2 = init_params(kp, d_model, d_ff)

    ffn = jax.jit(functools.partial(conformer_feed_forward))
    out = ffn(x, w1, b1, w2, b2)
    jax.block_until_ready(out)

    # Reference check in plain JAX (f32); kernel uses bf16 MXU operands -> looser tolerance.
    h_ref = x @ w1 + b1
    h_ref = h_ref * jax.nn.sigmoid(h_ref)
    ref = h_ref @ w2 + b2
    assert out.shape == (B, T, d_model)
    assert jnp.allclose(out, ref, atol=2e-2, rtol=2e-2), "mismatch vs reference"

    print("KERNEL_OK")
</pallas_src>

<mosaic_0001>
module attributes {stable_mosaic.version = 11 : i64} {
  func.func @_ffn_kernel(%arg0: i32, %arg1: i32, %arg2: memref<32x128xbf16, #tpu.memory_space<vmem>>, %arg3: memref<128x256xbf16, #tpu.memory_space<vmem>>, %arg4: memref<1x256xf32, #tpu.memory_space<vmem>>, %arg5: memref<256x128xbf16, #tpu.memory_space<vmem>>, %arg6: memref<1x128xf32, #tpu.memory_space<vmem>>, %arg7: memref<32x128xf32, #tpu.memory_space<vmem>>, %arg8: memref<32x128xf32, #tpu.memory_space<vmem>>) attributes {dimension_semantics = [#tpu.dimension_semantics<parallel>, #tpu.dimension_semantics<arbitrary>], iteration_bounds = array<i64: 1, 1>, scalar_prefetch = 0 : i64, scratch_operands = 1 : i64, tpu.core_type = #tpu.core_type<tc>, window_params = [{transform_indices = @transform_0, window_bounds = array<i64: 32, 128>}, {transform_indices = @transform_1, window_bounds = array<i64: 128, 256>}, {transform_indices = @transform_2, window_bounds = array<i64: 1, 256>}, {transform_indices = @transform_3, window_bounds = array<i64: 256, 128>}, {pipeline_mode = #tpu.pipeline_mode<synchronous>, transform_indices = @transform_4, window_bounds = array<i64: 1, 128>}, {transform_indices = @transform_5, window_bounds = array<i64: 32, 128>}]} {
    %c0_i32 = arith.constant 0 : i32
    %0 = arith.cmpi eq, %arg1, %c0_i32 : i32
    %1 = arith.extui %0 : i1 to i32
    %c0_i32_0 = arith.constant 0 : i32
    %2 = arith.cmpi ne, %1, %c0_i32_0 : i32
    scf.if %2 {
      %cst_16 = arith.constant 0.000000e+00 : f32
      %24 = vector.broadcast %cst_16 : f32 to vector<32x128xf32>
      %c0_17 = arith.constant 0 : index
      %c0_18 = arith.constant 0 : index
      %25 = vector.load %arg8[%c0_17, %c0_18] : memref<32x128xf32, #tpu.memory_space<vmem>>, vector<32x128xf32>
      tpu.vector_store %arg8[%c0_17, %c0_18], %24 {strides = array<i32>} : memref<32x128xf32, #tpu.memory_space<vmem>>, vector<32x128xf32>,
    } else {
    }
    %c0 = arith.constant 0 : index
    %c0_1 = arith.constant 0 : index
    %3 = vector.load %arg2[%c0, %c0_1] : memref<32x128xbf16, #tpu.memory_space<vmem>>, vector<32x128xbf16>
    %c0_2 = arith.constant 0 : index
    %c0_3 = arith.constant 0 : index
    %4 = vector.load %arg3[%c0_2, %c0_3] : memref<128x256xbf16, #tpu.memory_space<vmem>>, vector<128x256xbf16>
    %cst = arith.constant dense<0.000000e+00> : vector<32x256xf32>
    %5 = tpu.matmul %3, %4, %cst {dimension_numbers = #tpu.dot_dimension_numbers<[1], [0], [0], [1], [0, 0, 1, 1], [], []>} : vector<32x128xbf16>, vector<128x256xbf16>, vector<32x256xf32> -> vector<32x256xf32>
    %c0_4 = arith.constant 0 : index
    %c0_5 = arith.constant 0 : index
    %6 = vector.load %arg4[%c0_4, %c0_5] : memref<1x256xf32, #tpu.memory_space<vmem>>, vector<1x256xf32>
    %7 = vector.broadcast %6 : vector<1x256xf32> to vector<32x256xf32>
    %8 = arith.addf %5, %7 : vector<32x256xf32>
    %9 = arith.negf %8 : vector<32x256xf32>
    %10 = math.exp %9 : vector<32x256xf32>
    %cst_6 = arith.constant 1.000000e+00 : f32
    %11 = vector.broadcast %cst_6 : f32 to vector<32x256xf32>
    %12 = arith.addf %11, %10 : vector<32x256xf32>
    %13 = arith.divf %11, %12 : vector<32x256xf32>
    %14 = arith.mulf %8, %13 : vector<32x256xf32>
    %c0_7 = arith.constant 0 : index
    %c0_8 = arith.constant 0 : index
    %15 = vector.load %arg8[%c0_7, %c0_8] : memref<32x128xf32, #tpu.memory_space<vmem>>, vector<32x128xf32>
    %16 = arith.truncf %14 : vector<32x256xf32> to vector<32x256xbf16>
    %c0_9 = arith.constant 0 : index
    %c0_10 = arith.constant 0 : index
    %17 = vector.load %arg5[%c0_9, %c0_10] : memref<256x128xbf16, #tpu.memory_space<vmem>>, vector<256x128xbf16>
    %cst_11 = arith.constant dense<0.000000e+00> : vector<32x128xf32>
    %18 = tpu.matmul %16, %17, %cst_11 {dimension_numbers = #tpu.dot_dimension_numbers<[1], [0], [0], [1], [0, 0, 1, 1], [], []>} : vector<32x256xbf16>, vector<256x128xbf16>, vector<32x128xf32> -> vector<32x128xf32>
    %19 = arith.addf %15, %18 : vector<32x128xf32>
    %c0_12 = arith.constant 0 : index
    %c0_13 = arith.constant 0 : index
    %20 = vector.load %arg8[%c0_12, %c0_13] : memref<32x128xf32, #tpu.memory_space<vmem>>, vector<32x128xf32>
    tpu.vector_store %arg8[%c0_12, %c0_13], %19 {strides = array<i32>} : memref<32x128xf32, #tpu.memory_space<vmem>>, vector<32x128xf32>,
    %c0_i32_14 = arith.constant 0 : i32
    %21 = arith.cmpi eq, %arg1, %c0_i32_14 : i32
    %22 = arith.extui %21 : i1 to i32
    %c0_i32_15 = arith.constant 0 : i32
    %23 = arith.cmpi ne, %22, %c0_i32_15 : i32
    scf.if %23 {
      %c0_16 = arith.constant 0 : index
      %c0_17 = arith.constant 0 : index
      %24 = vector.load %arg8[%c0_16, %c0_17] : memref<32x128xf32, #tpu.memory_space<vmem>>, vector<32x128xf32>
      %c0_18 = arith.constant 0 : index
      %c0_19 = arith.constant 0 : index
      %25 = vector.load %arg6[%c0_18, %c0_19] : memref<1x128xf32, #tpu.memory_space<vmem>>, vector<1x128xf32>
      %26 = vector.broadcast %25 : vector<1x128xf32> to vector<32x128xf32>
      %27 = arith.addf %24, %26 : vector<32x128xf32>
      %c0_20 = arith.constant 0 : index
      %c0_21 = arith.constant 0 : index
      %28 = vector.load %arg7[%c0_20, %c0_21] : memref<32x128xf32, #tpu.memory_space<vmem>>, vector<32x128xf32>
      tpu.vector_store %arg7[%c0_20, %c0_21], %27 {strides = array<i32>} : memref<32x128xf32, #tpu.memory_space<vmem>>, vector<32x128xf32>,
    } else {
    }
    return
  }
  func.func @transform_0(%arg0: i32, %arg1: i32) -> (i32, i32) {
    %c0_i32 = arith.constant 0 : i32
    %c0_i32_0 = arith.constant 0 : i32
    return %arg0, %c0_i32 : i32, i32
  }
  func.func @transform_1(%arg0: i32, %arg1: i32) -> (i32, i32) {
    %c0_i32 = arith.constant 0 : i32
    %c0_i32_0 = arith.constant 0 : i32
    return %c0_i32, %arg1 : i32, i32
  }
  func.func @transform_2(%arg0: i32, %arg1: i32) -> (i32, i32) {
    %c0_i32 = arith.constant 0 : i32
    %c0_i32_0 = arith.constant 0 : i32
    return %c0_i32, %arg1 : i32, i32
  }
  func.func @transform_3(%arg0: i32, %arg1: i32) -> (i32, i32) {
    %c0_i32 = arith.constant 0 : i32
    %c0_i32_0 = arith.constant 0 : i32
    return %arg1, %c0_i32 : i32, i32
  }
  func.func @transform_4(%arg0: i32, %arg1: i32) -> (i32, i32) {
    %c0_i32 = arith.constant 0 : i32
    %c0_i32_0 = arith.constant 0 : i32
    %c0_i32_1 = arith.constant 0 : i32
    return %c0_i32, %c0_i32_0 : i32, i32
  }
  func.func @transform_5(%arg0: i32, %arg1: i32) -> (i32, i32) {
    %c0_i32 = arith.constant 0 : i32
    %c0_i32_0 = arith.constant 0 : i32
    return %arg0, %c0_i32 : i32, i32
  }
}

</mosaic_0001>

<llo_original>
// kernel: conformer_feed_forward.1
$region0: #{conformer_feed_forward.1}
  #allocation0 [shape = 'u32[]', space=smem, size = 0x4, offset = 0x4, fixed_abs, tag = 'smem constant byte address 0x4 - core index']
  #allocation1 [shape = 'u32[144,128]{1,0:T(1,128)}', space=vmem, size = 0x12000, scoped, tag = 'internal scratch']
  #allocation2 [shape = 'f32[32,128]{1,0:T(8,128)}', space=vmem, size = 0x4000, scoped, tag = 'scratch operand']
  %s0 = inlined_call_operand.vmem [shape: bf16[32,128], index: 0, kind: input, shape index: {}]
  %s1 = inlined_call_operand.vmem [shape: bf16[128,256], index: 1, kind: input, shape index: {}]
  %s2 = inlined_call_operand.vmem [shape: f32[1,256], index: 2, kind: input, shape index: {}]
  %s3 = inlined_call_operand.vmem [shape: bf16[256,128], index: 3, kind: input, shape index: {}]
  %s4 = inlined_call_operand.vmem [shape: f32[1,128], index: 4, kind: input, shape index: {}]
  %s5 = inlined_call_operand.hbm [shape: f32[32,128], index: 5, kind: output, shape index: {}]
  %s6 = sld [smem:[#allocation0]]
  $region38: #{conformer_feed_forward.1} parent=0
    _
  %s8 = ssub.s32 1, %s6
  %s9 = scalar_select 0, %s8, %s6
  $region1: #{conformer_feed_forward.1} parent=0
    #allocation3 [shape = 'u8[16384]{0}', space=vmem, size = 0x4000, scoped, tag = 'output window, operand 0, single buffered']
    #allocation4 [shape = 's32[1]{0}', space=sflag, size = 0x4, scoped, tag = 'scoped memory for conformer_feed_forward.1']
    %10 = vsyncpa [#allocation4], 0
    // Predicated region
    $region2: #{conformer_feed_forward.1} parent=1 // pred_check
      _
    $region3: #{conformer_feed_forward.1} parent=1 // pred_check_branch
      %12 = sbr.rel (0) target = $region5
    $region4: #{conformer_feed_forward.1} parent=1 // pred_region
      _
    $region5: #{conformer_feed_forward.1} parent=1 // pred_fallthru
      _
    // Predicated region
    $region6: #{conformer_feed_forward.1} parent=1 // pred_check
      _
    $region7: #{conformer_feed_forward.1} parent=1 // pred_check_branch
      %14 = sbr.rel (0) target = $region9
    $region8: #{conformer_feed_forward.1} parent=1 // pred_region
      _
    $region9: #{conformer_feed_forward.1} parent=1 // pred_fallthru
      _
    // Predicated region
    $region10: #{conformer_feed_forward.1} parent=1 // pred_check
      _
    $region11: #{conformer_feed_forward.1} parent=1 // pred_check_branch
      %16 = sbr.rel (0) target = $region13
    $region12: #{conformer_feed_forward.1} parent=1 // pred_region
      _
    $region13: #{conformer_feed_forward.1} parent=1 // pred_fallthru
      _
    // Predicated region
    $region14: #{conformer_feed_forward.1} parent=1 // pred_check
      _
    $region15: #{conformer_feed_forward.1} parent=1 // pred_check_branch
      %18 = sbr.rel (0) target = $region17
    $region16: #{conformer_feed_forward.1} parent=1 // pred_region
      _
    $region17: #{conformer_feed_forward.1} parent=1 // pred_fallthru
      _
    // Predicated region
    $region18: #{conformer_feed_forward.1} parent=1 // pred_check
      _
    $region19: #{conformer_feed_forward.1} parent=1 // pred_check_branch
      %20 = sbr.rel (0) target = $region21
    $region20: #{conformer_feed_forward.1} parent=1 // pred_region
      _
    $region21: #{conformer_feed_forward.1} parent=1 // pred_fallthru
      _
    %p22 = scmp.eq.s32.totalorder 0, 0
    // Predicated region
    $region22: #{conformer_feed_forward.1} parent=1 // pred_check
      %p23 = pneg %p22
    $region23: #{conformer_feed_forward.1} parent=1 // pred_check_branch
      %25 = sbr.rel (%p23) target = $region25
    $region24: #{conformer_feed_forward.1} parent=1 // pred_region
      %26 = vst [vmem:[#allocation2] sm:$0xff] 0.0
      %27 = vst [vmem:[#allocation2 + $0x8] sm:$0xff] 0.0
      %28 = vst [vmem:[#allocation2 + $0x10] sm:$0xff] 0.0
      %29 = vst [vmem:[#allocation2 + $0x18] sm:$0xff] 0.0
    $region25: #{conformer_feed_forward.1} parent=1 // pred_fallthru
      _
    %v30 = vld [vmem:[%s0] sm:$0xf]
    %v31 = vld [vmem:[%s0 + $0x4] sm:$0xf]
    %v32 = vld [vmem:[%s0 + $0x8] sm:$0xf]
    %v33 = vld [vmem:[%s0 + $0xc] sm:$0xf]
    %v34 = vld [vmem:[%s1] sm:$0xff]
    %v35 = vld [vmem:[%s1 + $0x8] sm:$0xff]
    %v36 = vld [vmem:[%s1 + $0x10] sm:$0xff]
    %v37 = vld [vmem:[%s1 + $0x18] sm:$0xff]
    %v38 = vld [vmem:[%s1 + $0x20] sm:$0xff]
    %v39 = vld [vmem:[%s1 + $0x28] sm:$0xff]
    %v40 = vld [vmem:[%s1 + $0x30] sm:$0xff]
    %v41 = vld [vmem:[%s1 + $0x38] sm:$0xff]
    %v42 = vld [vmem:[%s1 + $0x40] sm:$0xff]
    %v43 = vld [vmem:[%s1 + $0x48] sm:$0xff]
    %v44 = vld [vmem:[%s1 + $0x50] sm:$0xff]
    %v45 = vld [vmem:[%s1 + $0x58] sm:$0xff]
    %v46 = vld [vmem:[%s1 + $0x60] sm:$0xff]
    %v47 = vld [vmem:[%s1 + $0x68] sm:$0xff]
    %v48 = vld [vmem:[%s1 + $0x70] sm:$0xff]
    %v49 = vld [vmem:[%s1 + $0x78] sm:$0xff]
    %v50 = vld [vmem:[%s2] sm:$0x3]
    %v52 = vlaneseq
    %v53 = vshrl.u32 %v52, 7
    %v54 = vsub.s32 0, %v53
    %v55 = vrot.slane %v50, %v54
    %v56 = vlaneseq
    %v57 = vshrl.u32 %v56, 7
    %v58 = vsub.s32 1, %v57
    %v59 = vrot.slane %v50, %v58
    %v66 = vunpack.c.l.b16 %v30
    %v67 = vunpack.c.l.b16 %v31
    %v68 = vunpack.c.l.b16 %v32
    %v69 = vunpack.c.l.b16 %v33
    %v70 = vpack.c.b16 %v67, %v66
    %v71 = vpack.c.b16 %v69, %v68
    %v90 = vunpack.c.l.b16 %v34
    %v91 = vunpack.c.h.b16 %v34
    %v92 = vunpack.c.l.b16 %v35
    %v93 = vunpack.c.h.b16 %v35
    %v94 = vunpack.c.l.b16 %v36
    %v95 = vunpack.c.h.b16 %v36
    %v96 = vunpack.c.l.b16 %v37
    %v97 = vunpack.c.h.b16 %v37
    %v98 = vunpack.c.l.b16 %v38
    %v99 = vunpack.c.h.b16 %v38
    %v100 = vunpack.c.l.b16 %v39
    %v101 = vunpack.c.h.b16 %v39
    %v102 = vunpack.c.l.b16 %v40
    %v103 = vunpack.c.h.b16 %v40
    %v104 = vunpack.c.l.b16 %v41
    %v105 = vunpack.c.h.b16 %v41
    %v106 = vunpack.c.l.b16 %v42
    %v107 = vunpack.c.h.b16 %v42
    %v108 = vunpack.c.l.b16 %v43
    %v109 = vunpack.c.h.b16 %v43
    %v110 = vunpack.c.l.b16 %v44
    %v111 = vunpack.c.h.b16 %v44
    %v112 = vunpack.c.l.b16 %v45
    %v113 = vunpack.c.h.b16 %v45
    %v114 = vunpack.c.l.b16 %v46
    %v115 = vunpack.c.h.b16 %v46
    %v116 = vunpack.c.l.b16 %v47
    %v117 = vunpack.c.h.b16 %v47
    %v118 = vunpack.c.l.b16 %v48
    %v119 = vunpack.c.h.b16 %v48
    %v120 = vunpack.c.l.b16 %v49
    %v121 = vunpack.c.h.b16 %v49
    %v122 = vpack.c.b16 %v92, %v90
    %v123 = vpack.c.b16 %v93, %v91
    %v124 = vpack.c.b16 %v96, %v94
    %v125 = vpack.c.b16 %v97, %v95
    %v126 = vpack.c.b16 %v100, %v98
    %v127 = vpack.c.b16 %v101, %v99
    %v128 = vpack.c.b16 %v104, %v102
    %v129 = vpack.c.b16 %v105, %v103
    %v130 = vpack.c.b16 %v108, %v106
    %v131 = vpack.c.b16 %v109, %v107
    %v132 = vpack.c.b16 %v112, %v110
    %v133 = vpack.c.b16 %v113, %v111
    %v134 = vpack.c.b16 %v116, %v114
    %v135 = vpack.c.b16 %v117, %v115
    %v136 = vpack.c.b16 %v120, %v118
    %v137 = vpack.c.b16 %v121, %v119
    %154 = vmatprep.subr.bf16.mxu0 %v123
    %155 = vmatpush1.bf16.msra.mxu0 %v122
    %156 = vmatprep.subr.bf16.mxu0 %v125
    %157 = vmatpush1.bf16.msra.mxu0 %v124
    %158 = vmatprep.subr.bf16.mxu0 %v127
    %159 = vmatpush1.bf16.msra.mxu0 %v126
    %160 = vmatprep.subr.bf16.mxu0 %v129
    %161 = vmatpush1.bf16.msra.mxu0 %v128
    %162 = vmatprep.subr.bf16.mxu0 %v131
    %163 = vmatpush1.bf16.msra.mxu0 %v130
    %164 = vmatprep.subr.bf16.mxu0 %v133
    %165 = vmatpush1.bf16.msra.mxu0 %v132
    %166 = vmatprep.subr.bf16.mxu0 %v135
    %167 = vmatpush1.bf16.msra.mxu0 %v134
    %168 = vmatprep.subr.bf16.mxu0 %v137
    %169 = vmatpush1.bf16.msra.mxu0 %v136
    %170 = vmatprep.subr.bf16.mxu0 0
    %171 = vmatpush1.bf16.msra.mxu0 0
    %172 = vmatprep.subr.bf16.mxu0 0
    %173 = vmatpush1.bf16.msra.mxu0 0
    %174 = vmatprep.subr.bf16.mxu0 0
    %175 = vmatpush1.bf16.msra.mxu0 0
    %176 = vmatprep.subr.bf16.mxu0 0
    %177 = vmatpush1.bf16.msra.mxu0 0
    %178 = vmatprep.subr.bf16.mxu0 0
    %179 = vmatpush1.bf16.msra.mxu0 0
    %180 = vmatprep.subr.bf16.mxu0 0
    %181 = vmatpush1.bf16.msra.mxu0 0
    %182 = vmatprep.subr.bf16.mxu0 0
    %183 = vmatpush1.bf16.msra.mxu0 0
    %184 = vmatprep.subr.bf16.mxu0 0
    %185 = vmatpush1.bf16.msra.mxu0 0
    %186 = vmatprep.mubr.bf16.mxu0 0
    %187 = vmatmul.mubr.bf16.gmra.mrb[0].mxu0 %v70
    %v188 = vpop.f32.mrb[0].mxu0
    %v189 = vadd.f32 %v55, %v188
    %v190 = vpop.f32.mrb[0].mxu0
    %v191 = vadd.f32 %v59, %v190
    %v192 = vpop.f32.mrb[0].mxu0
    %v193 = vadd.f32 %v55, %v192
    %v194 = vpop.f32.mrb[0].mxu0
    %v195 = vadd.f32 %v59, %v194
    %196 = vmatprep.mubr.bf16.mxu0 0
    %197 = vmatmul.mubr.bf16.gmra.mrb[0].mxu0 %v71
    %v198 = vpop.f32.mrb[0].mxu0
    %v199 = vadd.f32 %v55, %v198
    %v200 = vpop.f32.mrb[0].mxu0
    %v201 = vadd.f32 %v59, %v200
    %v202 = vpop.f32.mrb[0].mxu0
    %v203 = vadd.f32 %v55, %v202
    %v204 = vpop.f32.mrb[0].mxu0
    %v205 = vadd.f32 %v59, %v204
    %206 = vdwg.mxu0
    %v207 = vxor.u32 %v189, 2147483648
    %v208 = vxor.u32 %v191, 2147483648
    %v209 = vxor.u32 %v193, 2147483648
    %v210 = vxor.u32 %v195, 2147483648
    %v211 = vxor.u32 %v199, 2147483648
    %v212 = vxor.u32 %v201, 2147483648
    %v213 = vxor.u32 %v203, 2147483648
    %v214 = vxor.u32 %v205, 2147483648
    %v215 = vmul.f32 %v207, 1.442695
    %v216 = vpow.pop %v215
    %v217 = vmul.f32 %v208, 1.442695
    %v218 = vpow.pop %v217
    %v219 = vmul.f32 %v209, 1.442695
    %v220 = vpow.pop %v219
    %v221 = vmul.f32 %v210, 1.442695
    %v222 = vpow.pop %v221
    %v223 = vmul.f32 %v211, 1.442695
    %v224 = vpow.pop %v223
    %v225 = vmul.f32 %v212, 1.442695
    %v226 = vpow.pop %v225
    %v227 = vmul.f32 %v213, 1.442695
    %v228 = vpow.pop %v227
    %v229 = vmul.f32 %v214, 1.442695
    %v230 = vpow.pop %v229
    %v231 = vadd.f32 %v216, 1.0
    %v232 = vadd.f32 %v218, 1.0
    %v233 = vadd.f32 %v220, 1.0
    %v234 = vadd.f32 %v222, 1.0
    %v235 = vadd.f32 %v224, 1.0
    %v236 = vadd.f32 %v226, 1.0
    %v237 = vadd.f32 %v228, 1.0
    %v238 = vadd.f32 %v230, 1.0
    %v239 = vrcp.pop %v231
    %v240 = vmul.f32 1.0, %v239
    %v241 = vrcp.pop %v232
    %v242 = vmul.f32 1.0, %v241
    %v243 = vrcp.pop %v233
    %v244 = vmul.f32 1.0, %v243
    %v245 = vrcp.pop %v234
    %v246 = vmul.f32 1.0, %v245
    %v247 = vrcp.pop %v235
    %v248 = vmul.f32 1.0, %v247
    %v249 = vrcp.pop %v236
    %v250 = vmul.f32 1.0, %v249
    %v251 = vrcp.pop %v237
    %v252 = vmul.f32 1.0, %v251
    %v253 = vrcp.pop %v238
    %v254 = vmul.f32 1.0, %v253
    %v255 = vmul.f32 %v189, %v240
    %v256 = vmul.f32 %v191, %v242
    %v257 = vmul.f32 %v193, %v244
    %v258 = vmul.f32 %v195, %v246
    %v259 = vmul.f32 %v199, %v248
    %v260 = vmul.f32 %v201, %v250
    %v261 = vmul.f32 %v203, %v252
    %v262 = vmul.f32 %v205, %v254
    %v263 = vld [vmem:[#allocation2] sm:$0xff]
    %v264 = vld [vmem:[#allocation2 + $0x8] sm:$0xff]
    %v265 = vld [vmem:[#allocation2 + $0x10] sm:$0xff]
    %v266 = vld [vmem:[#allocation2 + $0x18] sm:$0xff]
    %v267 = vpack.c.bf16 %v257, %v255
    %v268 = vpack.c.bf16 %v258, %v256
    %v269 = vpack.c.bf16 %v261, %v259
    %v270 = vpack.c.bf16 %v262, %v260
    %v271 = vld [vmem:[%s3] sm:$0xf]
    %v272 = vld [vmem:[%s3 + $0x4] sm:$0xf]
    %v273 = vld [vmem:[%s3 + $0x8] sm:$0xf]
    %v274 = vld [vmem:[%s3 + $0xc] sm:$0xf]
    %v275 = vld [vmem:[%s3 + $0x10] sm:$0xf]
    %v276 = vld [vmem:[%s3 + $0x14] sm:$0xf]
    %v277 = vld [vmem:[%s3 + $0x18] sm:$0xf]
    %v278 = vld [vmem:[%s3 + $0x1c] sm:$0xf]
    %v279 = vld [vmem:[%s3 + $0x20] sm:$0xf]
    %v280 = vld [vmem:[%s3 + $0x24] sm:$0xf]
    %v281 = vld [vmem:[%s3 + $0x28] sm:$0xf]
    %v282 = vld [vmem:[%s3 + $0x2c] sm:$0xf]
    %v283 = vld [vmem:[%s3 + $0x30] sm:$0xf]
    %v284 = vld [vmem:[%s3 + $0x34] sm:$0xf]
    %v285 = vld [vmem:[%s3 + $0x38] sm:$0xf]
    %v286 = vld [vmem:[%s3 + $0x3c] sm:$0xf]
    %v287 = vld [vmem:[%s3 + $0x40] sm:$0xf]
    %v288 = vld [vmem:[%s3 + $0x44] sm:$0xf]
    %v289 = vld [vmem:[%s3 + $0x48] sm:$0xf]
    %v290 = vld [vmem:[%s3 + $0x4c] sm:$0xf]
    %v291 = vld [vmem:[%s3 + $0x50] sm:$0xf]
    %v292 = vld [vmem:[%s3 + $0x54] sm:$0xf]
    %v293 = vld [vmem:[%s3 + $0x58] sm:$0xf]
    %v294 = vld [vmem:[%s3 + $0x5c] sm:$0xf]
    %v295 = vld [vmem:[%s3 + $0x60] sm:$0xf]
    %v296 = vld [vmem:[%s3 + $0x64] sm:$0xf]
    %v297 = vld [vmem:[%s3 + $0x68] sm:$0xf]
    %v298 = vld [vmem:[%s3 + $0x6c] sm:$0xf]
    %v299 = vld [vmem:[%s3 + $0x70] sm:$0xf]
    %v300 = vld [vmem:[%s3 + $0x74] sm:$0xf]
    %v301 = vld [vmem:[%s3 + $0x78] sm:$0xf]
    %v302 = vld [vmem:[%s3 + $0x7c] sm:$0xf]
    %v335 = vunpack.c.l.b16 %v271
    %v336 = vunpack.c.l.b16 %v272
    %v337 = vunpack.c.l.b16 %v273
    %v338 = vunpack.c.l.b16 %v274
    %v339 = vunpack.c.l.b16 %v275
    %v340 = vunpack.c.l.b16 %v276
    %v341 = vunpack.c.l.b16 %v277
    %v342 = vunpack.c.l.b16 %v278
    %v343 = vunpack.c.l.b16 %v279
    %v344 = vunpack.c.l.b16 %v280
    %v345 = vunpack.c.l.b16 %v281
    %v346 = vunpack.c.l.b16 %v282
    %v347 = vunpack.c.l.b16 %v283
    %v348 = vunpack.c.l.b16 %v284
    %v349 = vunpack.c.l.b16 %v285
    %v350 = vunpack.c.l.b16 %v286
    %v351 = vunpack.c.l.b16 %v287
    %v352 = vunpack.c.l.b16 %v288
    %v353 = vunpack.c.l.b16 %v289
    %v354 = vunpack.c.l.b16 %v290
    %v355 = vunpack.c.l.b16 %v291
    %v356 = vunpack.c.l.b16 %v292
    %v357 = vunpack.c.l.b16 %v293
    %v358 = vunpack.c.l.b16 %v294
    %v359 = vunpack.c.l.b16 %v295
    %v360 = vunpack.c.l.b16 %v296
    %v361 = vunpack.c.l.b16 %v297
    %v362 = vunpack.c.l.b16 %v298
    %v363 = vunpack.c.l.b16 %v299
    %v364 = vunpack.c.l.b16 %v300
    %v365 = vunpack.c.l.b16 %v301
    %v366 = vunpack.c.l.b16 %v302
    %v367 = vpack.c.b16 %v336, %v335
    %v368 = vpack.c.b16 %v338, %v337
    %v369 = vpack.c.b16 %v340, %v339
    %v370 = vpack.c.b16 %v342, %v341
    %v371 = vpack.c.b16 %v344, %v343
    %v372 = vpack.c.b16 %v346, %v345
    %v373 = vpack.c.b16 %v348, %v347
    %v374 = vpack.c.b16 %v350, %v349
    %v375 = vpack.c.b16 %v352, %v351
    %v376 = vpack.c.b16 %v354, %v353
    %v377 = vpack.c.b16 %v356, %v355
    %v378 = vpack.c.b16 %v358, %v357
    %v379 = vpack.c.b16 %v360, %v359
    %v380 = vpack.c.b16 %v362, %v361
    %v381 = vpack.c.b16 %v364, %v363
    %v382 = vpack.c.b16 %v366, %v365
    %399 = vmatprep.subr.bf16.mxu0 0
    %400 = vmatpush1.bf16.msra.mxu0 %v367
    %401 = vmatprep.subr.bf16.mxu0 0
    %402 = vmatpush1.bf16.msra.mxu0 %v368
    %403 = vmatprep.subr.bf16.mxu0 0
    %404 = vmatpush1.bf16.msra.mxu0 %v369
    %405 = vmatprep.subr.bf16.mxu0 0
    %406 = vmatpush1.bf16.msra.mxu0 %v370
    %407 = vmatprep.subr.bf16.mxu0 0
    %408 = vmatpush1.bf16.msra.mxu0 %v371
    %409 = vmatprep.subr.bf16.mxu0 0
    %410 = vmatpush1.bf16.msra.mxu0 %v372
    %411 = vmatprep.subr.bf16.mxu0 0
    %412 = vmatpush1.bf16.msra.mxu0 %v373
    %413 = vmatprep.subr.bf16.mxu0 0
    %414 = vmatpush1.bf16.msra.mxu0 %v374
    %415 = vmatprep.subr.bf16.mxu0 0
    %416 = vmatpush1.bf16.msra.mxu0 %v375
    %417 = vmatprep.subr.bf16.mxu0 0
    %418 = vmatpush1.bf16.msra.mxu0 %v376
    %419 = vmatprep.subr.bf16.mxu0 0
    %420 = vmatpush1.bf16.msra.mxu0 %v377
    %421 = vmatprep.subr.bf16.mxu0 0
    %422 = vmatpush1.bf16.msra.mxu0 %v378
    %423 = vmatprep.subr.bf16.mxu0 0
    %424 = vmatpush1.bf16.msra.mxu0 %v379
    %425 = vmatprep.subr.bf16.mxu0 0
    %426 = vmatpush1.bf16.msra.mxu0 %v380
    %427 = vmatprep.subr.bf16.mxu0 0
    %428 = vmatpush1.bf16.msra.mxu0 %v381
    %429 = vmatprep.subr.bf16.mxu0 0
    %430 = vmatpush1.bf16.msra.mxu0 %v382
    %431 = vmatprep.mubr.bf16.mxu0 %v268
    %432 = vmatmul.mubr.bf16.gmra.mrb[0].mxu0 %v267
    %v433 = vpop.f32.mrb[0].mxu0
    %v434 = vadd.f32 0.0, %v433
    %v435 = vpop.f32.mrb[0].mxu0
    %v436 = vpop.f32.mrb[0].mxu0
    %v437 = vadd.f32 0.0, %v436
    %v438 = vpop.f32.mrb[0].mxu0
    %439 = vmatprep.mubr.bf16.mxu0 %v270
    %440 = vmatmul.mubr.bf16.gmra.mrb[0].mxu0 %v269
    %v441 = vpop.f32.mrb[0].mxu0
    %v442 = vadd.f32 0.0, %v441
    %v443 = vpop.f32.mrb[0].mxu0
    %v444 = vpop.f32.mrb[0].mxu0
    %v445 = vadd.f32 0.0, %v444
    %v446 = vpop.f32.mrb[0].mxu0
    %447 = vdwg.mxu0
    %v448 = vadd.f32 %v263, %v434
    %v449 = vadd.f32 %v264, %v437
    %v450 = vadd.f32 %v265, %v442
    %v451 = vadd.f32 %v266, %v445
    %452 = vst [vmem:[#allocation2] sm:$0xff] %v448
    %453 = vst [vmem:[#allocation2 + $0x8] sm:$0xff] %v449
    %454 = vst [vmem:[#allocation2 + $0x10] sm:$0xff] %v450
    %455 = vst [vmem:[#allocation2 + $0x18] sm:$0xff] %v451
    // Predicated region
    $region26: #{conformer_feed_forward.1} parent=1 // pred_check
      %p456 = pneg %p22
    $region27: #{conformer_feed_forward.1} parent=1 // pred_check_branch
      %458 = sbr.rel (%p456) target = $region29
    $region28: #{conformer_feed_forward.1} parent=1 // pred_region
      %v459 = vld [vmem:[#allocation2] sm:$0xff]
      %v460 = vld [vmem:[#allocation2 + $0x8] sm:$0xff]
      %v461 = vld [vmem:[#allocation2 + $0x10] sm:$0xff]
      %v462 = vld [vmem:[#allocation2 + $0x18] sm:$0xff]
      %v463 = vld [vmem:[%s4] sm:$0x1]
      %v465 = vlaneseq
      %v466 = vshrl.u32 %v465, 7
      %v467 = vsub.s32 0, %v466
      %v468 = vrot.slane %v463, %v467
      %v470 = vadd.f32 %v459, %v468
      %v471 = vadd.f32 %v460, %v468
      %v472 = vadd.f32 %v461, %v468
      %v473 = vadd.f32 %v462, %v468
      %474 = vst [vmem:[#allocation3] sm:$0xff] %v470
      %475 = vst [vmem:[#allocation3 + $0x8] sm:$0xff] %v471
      %476 = vst [vmem:[#allocation3 + $0x10] sm:$0xff] %v472
      %477 = vst [vmem:[#allocation3 + $0x18] sm:$0xff] %v473
    $region29: #{conformer_feed_forward.1} parent=1 // pred_fallthru
      _
    // Predicated region
    $region30: #{conformer_feed_forward.1} parent=1 // pred_check
      _
    $region31: #{conformer_feed_forward.1} parent=1 // pred_check_branch
      %479 = sbr.rel (0) target = $region33
    $region32: #{conformer_feed_forward.1} parent=1 // pred_region
      %s481 = ssub.s32 512, 512
      %482 = vsyncadd [#allocation4], %s481
      %s483 = sshll.u32 [#allocation3], 4
      %s484 = int_to_ptr.vmem [resolvable:$true] %s483
      %489 = dma.vmem_to_hbm [thread:$0]  %s484, 512, %s5, [#allocation4], 128, 128, 8
    $region33: #{conformer_feed_forward.1} parent=1 // pred_fallthru
      _
    // Predicated region
    $region34: #{conformer_feed_forward.1} parent=1 // pred_check
      _
    $region35: #{conformer_feed_forward.1} parent=1 // pred_check_branch
      %491 = sbr.rel (0) target = $region37
    $region36: #{conformer_feed_forward.1} parent=1 // pred_region
      %492 = dma.done [#allocation4], 512
    $region37: #{conformer_feed_forward.1} parent=1 // pred_fallthru
      _
    %493 = vsyncpa [#allocation4], 1

</llo_original>
